<compile_context>
chip_gen: v7x
topology: tpu7x:2x2x1
jax: 0.10.0
libtpu: 0.0.40
codegen_flags: <defaults>
</compile_context>

<pallas_src>
import jax
import jax.numpy as jnp
from jax import lax
from jax.experimental import pallas as pl
from jax.experimental.pallas import tpu as pltpu


_SMALL_K = 8  # at/below this contraction size, drive the VPU instead of the MXU


def _round_up(n, m):
    return ((n + m - 1) // m) * m


def _small_k_matmul_and_rowsq(x, k):
    """Unrolled VPU outer-product matmul for tiny K; also returns sum(x^2, axis=1).

    x: (tm, c_in), k: (c_in, W).  Returns (wx_f32 (tm, W), x_sq_f32 (tm, 1)).
    """
    x32 = x.astype(jnp.float32)
    k32 = k.astype(jnp.float32)
    c_in = x.shape[1]
    wx = None
    x_sq = None
    for i in range(c_in):
        xc = x32[:, i:i + 1]                    # (tm, 1)  lane slice
        kr = k32[i:i + 1, :]                    # (1, W)   sublane slice
        term = xc * kr                          # (tm, W)  broadcast MAC (VPU)
        wx = term if wx is None else wx + term
        sq = xc * xc
        x_sq = sq if x_sq is None else x_sq + sq
    return wx, x_sq


def _virtual_layer_train_kernel(x_ref, wsq_ref, k_ref, out_ref):
    # x_ref  : (tm, c_in)    input dtype
    # wsq_ref: (tm, 1)       f32, precomputed ||kernel[:, y_i]||^2
    # k_ref  : (c_in, NC+1)  input dtype, last column is zero padding
    # out_ref: (tm, NC+1)    cols [0, NC) = WX, col NC = WX_VIRT
    x = x_ref[...]
    k = k_ref[...]
    tm, c_in = x.shape
    ncp1 = out_ref.shape[1]

    if c_in <= _SMALL_K:
        wx, x_sq = _small_k_matmul_and_rowsq(x, k)               # f32
    else:
        wx = jnp.dot(x, k, preferred_element_type=jnp.float32)   # (tm, NC+1)
        x32 = x.astype(jnp.float32)
        x_sq = jnp.sum(x32 * x32, axis=1, keepdims=True)         # (tm, 1)

    # ||kernel[:, y]|| * ||x|| fused as sqrt(a*b); clip absorbs f32 over/underflow.
    virt = jnp.clip(jnp.sqrt(wsq_ref[...] * x_sq), 0.0001, 50.0)  # (tm, 1) f32

    # Single dense store of the full-width output block: last column <- virt
    # (the matching kernel column is zero, so WX columns are untouched).
    col = lax.broadcasted_iota(jnp.int32, (tm, ncp1), 1)
    out = jnp.where(col == ncp1 - 1, virt, wx)
    out_ref[...] = out.astype(out_ref.dtype)


def _virtual_layer_eval_kernel(x_ref, k_ref, out_ref):
    x = x_ref[...]
    k = k_ref[...]
    c_in = x.shape[1]
    if c_in <= _SMALL_K:
        wx, _ = _small_k_matmul_and_rowsq(x, k)
    else:
        wx = jnp.dot(x, k, preferred_element_type=jnp.float32)
    out_ref[...] = wx.astype(out_ref.dtype)


def _pick_tm(B, bytes_per_row):
    """Batch tile: as large as possible (amortize ~0.35us/step), VMEM-budgeted,
    and >=2 grid steps when B is large enough so v7x megacore uses both TCs."""
    cap = max(8, (((16 << 20) // (2 * max(bytes_per_row, 1))) // 8) * 8)
    if B <= min(512, cap):
        return B                       # single step; problem too small to split
    tm = min(1024, _round_up(pl.cdiv(B, 2), 8), cap)
    return max(8, tm)


def virtual_layer_forward(x, y, kernel, *, training=True):
    """Pallas implementation of virtual_layer.forward.

    x:      (B, C_IN)            float32 / bfloat16
    y:      (B,)                 integer labels in [0, num_classes)
    kernel: (C_IN, num_classes)  float32 / bfloat16
    """
    B, c_in = x.shape
    nc = kernel.shape[1]
    out_dtype = jnp.result_type(x.dtype, kernel.dtype)
    isz_in = jnp.dtype(x.dtype).itemsize
    isz_k = jnp.dtype(kernel.dtype).itemsize
    isz_out = jnp.dtype(out_dtype).itemsize

    if not training:
        bytes_per_row = (_round_up(c_in, 128) * isz_in
                         + _round_up(nc, 128) * isz_out)
        tm = _pick_tm(B, bytes_per_row)
        grid = (pl.cdiv(B, tm),)
        k_block = _round_up(c_in, 8) * _round_up(nc, 128) * isz_k
        vmem_need = 2 * tm * bytes_per_row + 2 * k_block + (4 << 20)
        params = pltpu.CompilerParams(
            dimension_semantics=("parallel",),
            vmem_limit_bytes=int(min(max(32 << 20, vmem_need), 96 << 20)),
        )
        cost = pl.CostEstimate(
            flops=2 * B * c_in * nc,
            transcendentals=0,
            bytes_accessed=int(x.size * isz_in + kernel.size * isz_k
                               + B * nc * isz_out),
        )
        return pl.pallas_call(
            _virtual_layer_eval_kernel,
            grid=grid,
            in_specs=[pl.BlockSpec((tm, c_in), lambda i: (i, 0)),
                      pl.BlockSpec((c_in, nc), lambda i: (0, 0))],   # resident
            out_specs=pl.BlockSpec((tm, nc), lambda i: (i, 0)),
            out_shape=jax.ShapeDtypeStruct((B, nc), out_dtype),
            compiler_params=params,
            cost_estimate=cost,
        )(x, kernel)

    # --- training path ---------------------------------------------------
    # Wrapper-side O(B) gather of per-sample squared column norms of kernel
    # (replaces an in-kernel one-hot select; y never enters the kernel).
    k32 = kernel.astype(jnp.float32)
    col_sq = jnp.sum(k32 * k32, axis=0)                              # (NC,)
    w_yi_sq = jnp.take(col_sq, y.astype(jnp.int32)).reshape(B, 1)    # (B, 1) f32

    # Zero-pad kernel by one column so WX and WX_VIRT land in one output block.
    k_aug = jnp.concatenate(
        [kernel, jnp.zeros((c_in, 1), kernel.dtype)], axis=1)        # (C_IN, NC+1)

    bytes_per_row = (_round_up(c_in, 128) * isz_in
                     + 128 * 4                                       # wsq (f32, 1 lane padded)
                     + _round_up(nc + 1, 128) * isz_out)
    tm = _pick_tm(B, bytes_per_row)
    grid = (pl.cdiv(B, tm),)
    # Note: when B % tm != 0 the trailing partial block relies on Pallas OOB
    # masking; virt is per-row so any padded-row garbage stays in dropped rows.
    k_block = _round_up(c_in, 8) * _round_up(nc + 1, 128) * isz_k
    vmem_need = 2 * tm * bytes_per_row + 2 * k_block + (4 << 20)
    params = pltpu.CompilerParams(
        dimension_semantics=("parallel",),
        vmem_limit_bytes=int(min(max(32 << 20, vmem_need), 96 << 20)),
    )
    cost = pl.CostEstimate(
        flops=2 * B * c_in * (nc + 1) + 4 * B * c_in,
        transcendentals=B,
        bytes_accessed=int(x.size * isz_in + c_in * (nc + 1) * isz_k
                           + B * 4 + B * (nc + 1) * isz_out),
    )

    return pl.pallas_call(
        _virtual_layer_train_kernel,
        grid=grid,
        in_specs=[pl.BlockSpec((tm, c_in), lambda i: (i, 0)),
                  pl.BlockSpec((tm, 1), lambda i: (i, 0)),
                  pl.BlockSpec((c_in, nc + 1), lambda i: (0, 0))],   # resident
        out_specs=pl.BlockSpec((tm, nc + 1), lambda i: (i, 0)),
        out_shape=jax.ShapeDtypeStruct((B, nc + 1), out_dtype),
        compiler_params=params,
        cost_estimate=cost,
    )(x, w_yi_sq, k_aug)


def _reference_forward(x, y, kernel, training=True):
    wx = x @ kernel
    if not training:
        return wx
    w_yi = kernel[:, y]                                  # (C_IN, B)
    w_yi_norm = jnp.linalg.norm(w_yi.T, axis=1)          # (B,)
    x_norm = jnp.linalg.norm(x, axis=1)                  # (B,)
    wx_virt = jnp.clip(w_yi_norm * x_norm, 0.0001, 50.0)[:, None]
    return jnp.concatenate([wx, wx_virt], axis=1)


if __name__ == "__main__":
    B = 8
    C_IN = 2          # hardcoded by the PyTorch module
    NUM_CLASSES = 8

    key = jax.random.PRNGKey(0)
    kx, ky, kk = jax.random.split(key, 3)

    # Mirrors torch.rand(c_in, num_classes).
    kernel = jax.random.uniform(kk, (C_IN, NUM_CLASSES), dtype=jnp.float32)
    # TODO(synk): self.fc = nn.Linear(c_in, num_classes) is never used in
    #             forward; it is not instantiated here.

    x = jax.random.normal(kx, (B, C_IN), dtype=jnp.float32)
    y = jax.random.randint(ky, (B,), 0, NUM_CLASSES, dtype=jnp.int32)

    out_train = jax.block_until_ready(virtual_layer_forward(x, y, kernel, training=True))
    out_eval = jax.block_until_ready(virtual_layer_forward(x, y, kernel, training=False))

    ref_train = _reference_forward(x, y, kernel, training=True)
    ref_eval = _reference_forward(x, y, kernel, training=False)

    assert out_train.shape == (B, NUM_CLASSES + 1)
    assert out_eval.shape == (B, NUM_CLASSES)
    assert jnp.allclose(out_train, ref_train, atol=1e-5, rtol=1e-5)
    assert jnp.allclose(out_eval, ref_eval, atol=1e-5, rtol=1e-5)

    print("KERNEL_OK")
</pallas_src>

<mosaic_0001>
module attributes {stable_mosaic.version = 11 : i64} {
  func.func @_virtual_layer_train_kernel(%arg0: i32, %arg1: memref<8x2xf32, #tpu.memory_space<vmem>>, %arg2: memref<8x1xf32, #tpu.memory_space<vmem>>, %arg3: memref<2x9xf32, #tpu.memory_space<vmem>>, %arg4: memref<8x9xf32, #tpu.memory_space<vmem>>) attributes {dimension_semantics = [#tpu.dimension_semantics<parallel>], iteration_bounds = array<i64: 1>, scalar_prefetch = 0 : i64, scratch_operands = 0 : i64, tpu.core_type = #tpu.core_type<tc>, window_params = [{transform_indices = @transform_0, window_bounds = array<i64: 8, 2>}, {transform_indices = @transform_1, window_bounds = array<i64: 8, 1>}, {pipeline_mode = #tpu.pipeline_mode<synchronous>, transform_indices = @transform_2, window_bounds = array<i64: 2, 9>}, {transform_indices = @transform_3, window_bounds = array<i64: 8, 9>}]} {
    %c0 = arith.constant 0 : index
    %c0_0 = arith.constant 0 : index
    %0 = vector.load %arg1[%c0, %c0_0] : memref<8x2xf32, #tpu.memory_space<vmem>>, vector<8x2xf32>
    %c0_1 = arith.constant 0 : index
    %c0_2 = arith.constant 0 : index
    %1 = vector.load %arg3[%c0_1, %c0_2] : memref<2x9xf32, #tpu.memory_space<vmem>>, vector<2x9xf32>
    %2 = vector.extract_strided_slice %0 {offsets = [0, 0], sizes = [8, 1], strides = [1, 1]} : vector<8x2xf32> to vector<8x1xf32>
    %3 = vector.extract_strided_slice %1 {offsets = [0, 0], sizes = [1, 9], strides = [1, 1]} : vector<2x9xf32> to vector<1x9xf32>
    %4 = vector.broadcast %2 : vector<8x1xf32> to vector<8x9xf32>
    %5 = vector.broadcast %3 : vector<1x9xf32> to vector<8x9xf32>
    %6 = arith.mulf %4, %5 : vector<8x9xf32>
    %7 = arith.mulf %2, %2 : vector<8x1xf32>
    %8 = vector.extract_strided_slice %0 {offsets = [0, 1], sizes = [8, 1], strides = [1, 1]} : vector<8x2xf32> to vector<8x1xf32>
    %9 = vector.extract_strided_slice %1 {offsets = [1, 0], sizes = [1, 9], strides = [1, 1]} : vector<2x9xf32> to vector<1x9xf32>
    %10 = vector.broadcast %8 : vector<8x1xf32> to vector<8x9xf32>
    %11 = vector.broadcast %9 : vector<1x9xf32> to vector<8x9xf32>
    %12 = arith.mulf %10, %11 : vector<8x9xf32>
    %13 = arith.addf %6, %12 : vector<8x9xf32>
    %14 = arith.mulf %8, %8 : vector<8x1xf32>
    %15 = arith.addf %7, %14 : vector<8x1xf32>
    %c0_3 = arith.constant 0 : index
    %c0_4 = arith.constant 0 : index
    %16 = vector.load %arg2[%c0_3, %c0_4] : memref<8x1xf32, #tpu.memory_space<vmem>>, vector<8x1xf32>
    %17 = arith.mulf %16, %15 : vector<8x1xf32>
    %18 = math.sqrt %17 : vector<8x1xf32>
    %cst = arith.constant 9.99999974E-5 : f32
    %cst_5 = arith.constant 5.000000e+01 : f32
    %19 = vector.broadcast %cst : f32 to vector<8x1xf32>
    %20 = arith.maximumf %19, %18 : vector<8x1xf32>
    %21 = vector.broadcast %cst_5 : f32 to vector<8x1xf32>
    %22 = arith.minimumf %21, %20 : vector<8x1xf32>
    %23 = tpu.iota {dimensions = array<i32: 1>} : vector<8x9xi32>
    %c8_i32 = arith.constant 8 : i32
    %24 = vector.broadcast %c8_i32 : i32 to vector<8x9xi32>
    %25 = arith.cmpi eq, %23, %24 : vector<8x9xi32>
    %26 = vector.shape_cast %22 : vector<8x1xf32> to vector<8x1xf32>
    %27 = vector.broadcast %26 : vector<8x1xf32> to vector<8x9xf32>
    %28 = arith.select %25, %27, %13 : vector<8x9xi1>, vector<8x9xf32>
    %c0_6 = arith.constant 0 : index
    %c0_7 = arith.constant 0 : index
    %29 = vector.load %arg4[%c0_6, %c0_7] : memref<8x9xf32, #tpu.memory_space<vmem>>, vector<8x9xf32>
    tpu.vector_store %arg4[%c0_6, %c0_7], %28 {strides = array<i32>} : memref<8x9xf32, #tpu.memory_space<vmem>>, vector<8x9xf32>,
    return
  }
  func.func @transform_0(%arg0: i32) -> (i32, i32) {
    %c0_i32 = arith.constant 0 : i32
    %c0_i32_0 = arith.constant 0 : i32
    return %arg0, %c0_i32 : i32, i32
  }
  func.func @transform_1(%arg0: i32) -> (i32, i32) {
    %c0_i32 = arith.constant 0 : i32
    %c0_i32_0 = arith.constant 0 : i32
    return %arg0, %c0_i32 : i32, i32
  }
  func.func @transform_2(%arg0: i32) -> (i32, i32) {
    %c0_i32 = arith.constant 0 : i32
    %c0_i32_0 = arith.constant 0 : i32
    %c0_i32_1 = arith.constant 0 : i32
    return %c0_i32, %c0_i32_0 : i32, i32
  }
  func.func @transform_3(%arg0: i32) -> (i32, i32) {
    %c0_i32 = arith.constant 0 : i32
    %c0_i32_0 = arith.constant 0 : i32
    return %arg0, %c0_i32 : i32, i32
  }
}

</mosaic_0001>

<llo_original>
// kernel: tpu_custom_call.1
$region0: #{tpu_custom_call.1}
  #allocation0 [shape = 'u32[]', space=smem, size = 0x4, offset = 0x4, fixed_abs, tag = 'smem constant byte address 0x4 - core index']
  #allocation1 [shape = 'u32[144,128]{1,0:T(1,128)}', space=vmem, size = 0x12000, scoped, tag = 'internal scratch']
  %s0 = inlined_call_operand.vmem [shape: f32[8,2], index: 0, kind: input, shape index: {}]
  %s1 = inlined_call_operand.vmem [shape: f32[8,1], index: 1, kind: input, shape index: {}]
  %s2 = inlined_call_operand.vmem [shape: f32[2,9], index: 2, kind: input, shape index: {}]
  %s3 = inlined_call_operand.hbm [shape: f32[8,9], index: 3, kind: output, shape index: {}]
  %s4 = sld [smem:[#allocation0]]
  $region22: #{tpu_custom_call.1} parent=0
    _
  %s6 = ssub.s32 1, %s4
  %s7 = scalar_select 0, %s6, %s4
  $region1: #{tpu_custom_call.1} parent=0
    #allocation2 [shape = 'u8[4096]{0}', space=vmem, size = 0x1000, scoped, tag = 'output window, operand 0, single buffered']
    #allocation3 [shape = 's32[1]{0}', space=sflag, size = 0x4, scoped, tag = 'scoped memory for tpu_custom_call.1']
    %8 = vsyncpa [#allocation3], 0
    // Predicated region
    $region2: #{tpu_custom_call.1} parent=1 // pred_check
      _
    $region3: #{tpu_custom_call.1} parent=1 // pred_check_branch
      %10 = sbr.rel (0) target = $region5
    $region4: #{tpu_custom_call.1} parent=1 // pred_region
      _
    $region5: #{tpu_custom_call.1} parent=1 // pred_fallthru
      _
    // Predicated region
    $region6: #{tpu_custom_call.1} parent=1 // pred_check
      _
    $region7: #{tpu_custom_call.1} parent=1 // pred_check_branch
      %12 = sbr.rel (0) target = $region9
    $region8: #{tpu_custom_call.1} parent=1 // pred_region
      _
    $region9: #{tpu_custom_call.1} parent=1 // pred_fallthru
      _
    // Predicated region
    $region10: #{tpu_custom_call.1} parent=1 // pred_check
      _
    $region11: #{tpu_custom_call.1} parent=1 // pred_check_branch
      %14 = sbr.rel (0) target = $region13
    $region12: #{tpu_custom_call.1} parent=1 // pred_region
      _
    $region13: #{tpu_custom_call.1} parent=1 // pred_fallthru
      _
    %v15 = vld [vmem:[%s0] sm:$0xff]
    %v16 = vld [vmem:[%s2] sm:$0x3]
    %18 = vset.pattern.permute.xlu0 0
    %19 = vperm.xlu0 %18, %v15
    %v20 = vpop.permute.xlu0 %19
    %v22 = vlaneseq
    %v23 = vshrl.u32 %v22, 7
    %v24 = vsub.s32 0, %v23
    %v25 = vrot.slane %v16, %v24
    %v26 = vmul.f32 %v20, %v25
    %v27 = vmul.f32 %v15, %v15
    %28 = vset.pattern.permute.xlu0 1
    %29 = vperm.xlu0 %28, %v15
    %v30 = vpop.permute.xlu0 %29
    %v32 = vlaneseq
    %v33 = vshrl.u32 %v32, 7
    %v34 = vsub.s32 1, %v33
    %v35 = vrot.slane %v16, %v34
    %v36 = vmul.f32 %v30, %v35
    %v37 = vadd.f32 %v26, %v36
    %39 = vrot.lane.b32.xlu0 %v27, 127
    %v40 = vpop.permute.xlu0 %39
    %v42 = vadd.f32 %v27, %v40
    %v43 = vld [vmem:[%s1] sm:$0xff]
    %v44 = vmul.f32 %v43, %v42
    %v45 = vrsqrt.pop %v44
    %v46 = vmul.f32 %v44, %v45
    %vm47 = vcmp.eq.f32.partialorder %v44, inf
    %v48 = vsel %vm47, %v44, %v46
    %vm49 = vcmp.eq.f32.partialorder %v44, 0.0
    %v50 = vand.u32 %v44, 2147483648
    %v51 = vsel %vm49, %v50, %v48
    %v52 = vmax.f32 %v51, 0.0001
    %v53 = vmin.f32 %v52, 50.0
    %v54 = vlaneseq
    %v55 = vand.u32 %v54, 127
    %vm56 = vcmp.eq.s32.totalorder %v55, 8
    %58 = vset.pattern.permute.xlu0 0
    %59 = vperm.xlu0 %58, %v53
    %v60 = vpop.permute.xlu0 %59
    %v62 = vsel %vm56, %v60, %v37
    %vm63 = vcmask 72704
    %64 = vst.msk [vmem:[#allocation2] sm:$0xff] %vm63, %v62
    // Predicated region
    $region14: #{tpu_custom_call.1} parent=1 // pred_check
      _
    $region15: #{tpu_custom_call.1} parent=1 // pred_check_branch
      %66 = sbr.rel (0) target = $region17
    $region16: #{tpu_custom_call.1} parent=1 // pred_region
      %s68 = ssub.s32 128, 128
      %69 = vsyncadd [#allocation3], %s68
      %s71 = sshll.u32 [#allocation2], 4
      %s72 = int_to_ptr.vmem [resolvable:$true] %s71
      %74 = dma.vmem_to_hbm [thread:$0]  %s72, 128, %s3, [#allocation3]
    $region17: #{tpu_custom_call.1} parent=1 // pred_fallthru
      _
    // Predicated region
    $region18: #{tpu_custom_call.1} parent=1 // pred_check
      _
    $region19: #{tpu_custom_call.1} parent=1 // pred_check_branch
      %76 = sbr.rel (0) target = $region21
    $region20: #{tpu_custom_call.1} parent=1 // pred_region
      %77 = dma.done [#allocation3], 128
    $region21: #{tpu_custom_call.1} parent=1 // pred_fallthru
      _
    %78 = vsyncpa [#allocation3], 1

</llo_original>
